<compile_context>
chip_gen: v7x
topology: tpu7x:2x2x1
jax: 0.10.0
libtpu: 0.0.40
codegen_flags: <defaults>
</compile_context>

<pallas_src>
import functools

import jax
import jax.numpy as jnp
from jax import lax
from jax.experimental import pallas as pl
from jax.experimental.pallas import tpu as pltpu

LANE = 128
ACC_ROWS = 64   # rows of the per-core vector accumulator (= 8 independent f32 vregs)
ROW_UNIT = 64   # row tiles are multiples of this (>= int8 min sublane tile of 32)


def _bce_sum_kernel(p_ref, t_ref, m_ref, out_ref, *,
                    steps, n_blocks, n_rows, row_tile, has_phantom):
    c = pl.program_id(0)          # core-split axis
    j = pl.program_id(1)          # streaming / reduction axis ("arbitrary")
    b = c * steps + j             # global row-block index

    @pl.when(j == 0)
    def _init():
        out_ref[...] = jnp.zeros_like(out_ref)

    def block_sum(x):
        # Reduce a (row_tile, 128) block into (ACC_ROWS, 128): pure VPU adds
        # over 8 independent accumulator vregs (no cross-lane work, no single
        # long dependent add chain).
        return jnp.sum(x.reshape(row_tile // ACC_ROWS, ACC_ROWS, LANE), axis=0)

    def accumulate():
        m = m_ref[...].astype(jnp.float32)
        p = p_ref[...].astype(jnp.float32) * m
        t = t_ref[...].astype(jnp.float32) * m

        # torch.nn.BCELoss clamps both log terms at -100.
        log_p = jnp.maximum(jnp.log(p), -100.0)
        log_1mp = jnp.maximum(jnp.log(1.0 - p), -100.0)
        # Factored form of -(t*log_p + (1-t)*log_1mp): one fewer mul/sub.
        loss = -(t * (log_p - log_1mp) + log_1mp)

        if n_rows % row_tile != 0:
            # Only the last real block contains undefined padding rows; keep
            # the iota/compare/select off the steady-state path. The select
            # (not a multiply!) discards any NaN/Inf produced by garbage rows.
            @pl.when(b == n_blocks - 1)
            def _tail():
                row = (n_blocks - 1) * row_tile + lax.broadcasted_iota(
                    jnp.int32, (row_tile, LANE), 0)
                out_ref[...] += block_sum(jnp.where(row < n_rows, loss, 0.0))

            @pl.when(b < n_blocks - 1)
            def _full():
                out_ref[...] += block_sum(loss)
        else:
            out_ref[...] += block_sum(loss)

    if has_phantom:
        # Only present when the core split does not divide n_blocks evenly.
        @pl.when(b < n_blocks)
        def _():
            accumulate()
    else:
        accumulate()


@functools.partial(
    jax.jit,
    static_argnames=("row_tile", "num_cores", "buffers", "vmem_limit_bytes"))
def _bce_loss_impl(ypred, ytgt, mask, *, row_tile, num_cores, buffers,
                   vmem_limit_bytes):
    n_elems = ypred.size  # denominator for the 'mean' reduction

    def to_slab(x):
        flat = x.reshape(-1)
        rem = flat.size % LANE
        if rem:
            # Rare non-lane-aligned tail: zero-pad (zeros contribute exactly 0
            # to the clamped BCE sum since p = t = m = 0 there).
            flat = jnp.pad(flat, (0, LANE - rem))
        return flat.reshape(-1, LANE)

    p2 = to_slab(ypred)
    t2 = to_slab(ytgt)   # caller dtype kept (int8 / bf16 exact for 0/1 values)
    m2 = to_slab(mask)   # caller dtype kept

    n_rows = p2.shape[0]
    if n_rows < ROW_UNIT:
        # Tiny inputs only (< 64*128 elements): zero-pad rows so the block
        # satisfies the min sublane tile for every supported input dtype.
        pad = ROW_UNIT - n_rows
        p2 = jnp.pad(p2, ((0, pad), (0, 0)))
        t2 = jnp.pad(t2, ((0, pad), (0, 0)))
        m2 = jnp.pad(m2, ((0, pad), (0, 0)))
        n_rows = ROW_UNIT

    # Block row count: multiple of ROW_UNIT, never larger than the data.
    row_tile = max(ROW_UNIT, min(row_tile, (n_rows // ROW_UNIT) * ROW_UNIT))

    n_blocks = pl.cdiv(n_rows, row_tile)
    steps = pl.cdiv(n_blocks, num_cores)
    has_phantom = (num_cores * steps != n_blocks)

    if has_phantom:
        def in_index_map(c, j):
            # Clamp phantom blocks (b >= n_blocks) onto valid memory; their
            # contribution is skipped in-kernel via pl.when.
            return (jnp.minimum(c * steps + j, n_blocks - 1), 0)
    else:
        def in_index_map(c, j):
            return (c * steps + j, 0)

    spec_kwargs = {}
    if buffers != 2:  # deeper input pipelining (v7x tuning)
        spec_kwargs = dict(pipeline_mode=pl.Buffered(buffers))
    in_specs = [pl.BlockSpec((row_tile, LANE), in_index_map, **spec_kwargs)
                for _ in range(3)]

    if num_cores > 1:
        # Explicit megacore split (v7x): guarantee the 2-TC shard of the
        # streaming axis.
        dim_sem = (pltpu.CORE_PARALLEL, pltpu.ARBITRARY)
    else:
        dim_sem = ("arbitrary", "arbitrary")

    kernel = functools.partial(
        _bce_sum_kernel, steps=steps, n_blocks=n_blocks, n_rows=n_rows,
        row_tile=row_tile, has_phantom=has_phantom)

    bytes_in = sum(int(a.size) * a.dtype.itemsize for a in (p2, t2, m2))
    bytes_out = num_cores * ACC_ROWS * LANE * 4

    partials = pl.pallas_call(
        kernel,
        out_shape=jax.ShapeDtypeStruct((num_cores * ACC_ROWS, LANE),
                                       jnp.float32),
        grid_spec=pltpu.PrefetchScalarGridSpec(
            num_scalar_prefetch=0,
            grid=(num_cores, steps),
            in_specs=in_specs,
            # Output block is the per-core accumulator: constant block index
            # along the reduction axis -> resident in VMEM, written back once.
            out_specs=pl.BlockSpec((ACC_ROWS, LANE), lambda c, j: (c, 0)),
        ),
        compiler_params=pltpu.CompilerParams(
            dimension_semantics=dim_sem,
            vmem_limit_bytes=vmem_limit_bytes,
        ),
        cost_estimate=pl.CostEstimate(
            flops=10 * n_elems,
            transcendentals=2 * n_elems,
            bytes_accessed=bytes_in + bytes_out),
    )(p2, t2, m2)

    # Tiny final reduce (num_cores*64*128 f32) + mean in the wrapper.
    # Reciprocal computed in Python double: exact even past 2**24 elements.
    inv_n = 1.0 / float(n_elems)
    return jnp.sum(partials) * jnp.float32(inv_n)


def bce_loss(ypred, ytgt, mask, row_tile=None, num_cores=None):
    """Masked BCE loss, mean reduction over all elements (PyTorch BCELoss).

    ytgt / mask may (and should) be supplied as int8 or bfloat16 produced at
    the source — exact for 0/1 values and cuts HBM read traffic by ~25-37%.
    (Casting them inside this wrapper would be a separate HBM round trip and
    erase the win, so no wrapper-side narrowing is performed.)
    """
    assert ypred.shape == ytgt.shape == mask.shape

    kind = jax.devices()[0].device_kind.lower()
    is_v7 = "v7" in kind
    if num_cores is None:
        num_cores = 2 if is_v7 else 1          # 2 TCs only on v7x
    if row_tile is None:
        row_tile = 8192 if is_v7 else 2048     # bigger steps vs 3.2 TB/s HBM
    buffers = 3 if is_v7 else 2                # deeper pipelining on v7x
    vmem_limit = (48 if is_v7 else 32) * 1024 * 1024

    def prep(x):
        if x.dtype == jnp.bool_:
            x = x.astype(jnp.int8)   # byte-width preserving; avoids bool refs
        return x

    return _bce_loss_impl(prep(ypred), prep(ytgt), prep(mask),
                          row_tile=int(row_tile), num_cores=int(num_cores),
                          buffers=int(buffers),
                          vmem_limit_bytes=int(vmem_limit))


if __name__ == "__main__":
    key = jax.random.PRNGKey(0)

    def make_inputs(k, shape):
        k1, k2, k3 = jax.random.split(k, 3)
        # Predictions in (0,1) as BCELoss expects probabilities.
        ypred = jax.nn.sigmoid(
            jax.random.normal(k1, shape, dtype=jnp.float32))
        # Targets / mask produced directly as int8 AT THE SOURCE (0/1 values):
        # 1 byte/element each instead of 4 -> less HBM read traffic.
        ytgt = jax.random.bernoulli(k2, 0.5, shape).astype(jnp.int8)
        mask = jax.random.bernoulli(k3, 0.7, shape).astype(jnp.int8)
        return ypred, ytgt, mask

    def reference(ypred, ytgt, mask):
        m = mask.astype(jnp.float32)
        p = ypred.astype(jnp.float32) * m
        t = ytgt.astype(jnp.float32) * m
        return jnp.mean(
            -(t * jnp.maximum(jnp.log(p), -100.0)
              + (1.0 - t) * jnp.maximum(jnp.log(1.0 - p), -100.0)))

    shapes = [
        (2, 4, 16, 16),   # primary NCHW occupancy-grid style shape
        (2, 4, 40, 40),   # multi-block grid with a ragged last row-block
        (2, 3, 7, 11),    # non-lane-aligned element count (pad path)
    ]
    keys = jax.random.split(key, len(shapes))
    for k, shape in zip(keys, shapes):
        yp, yt, mk = make_inputs(k, shape)
        loss = bce_loss(yp, yt, mk)
        jax.block_until_ready(loss)
        ref = reference(yp, yt, mk)
        assert jnp.allclose(loss, ref, rtol=1e-5, atol=1e-5), (shape, loss, ref)

    print("KERNEL_OK")
</pallas_src>

<mosaic_0001>
module attributes {stable_mosaic.version = 11 : i64} {
  func.func @_bce_sum_kernel(%arg0: i32, %arg1: i32, %arg2: memref<64x128xf32, #tpu.memory_space<vmem>>, %arg3: memref<64x128xi8, #tpu.memory_space<vmem>>, %arg4: memref<64x128xi8, #tpu.memory_space<vmem>>, %arg5: memref<64x128xf32, #tpu.memory_space<vmem>>) attributes {dimension_semantics = [#tpu.dimension_semantics<arbitrary>, #tpu.dimension_semantics<arbitrary>], iteration_bounds = array<i64: 1, 1>, scalar_prefetch = 0 : i64, scratch_operands = 0 : i64, tpu.core_type = #tpu.core_type<tc>, window_params = [{transform_indices = @transform_0, window_bounds = array<i64: 64, 128>}, {transform_indices = @transform_1, window_bounds = array<i64: 64, 128>}, {transform_indices = @transform_2, window_bounds = array<i64: 64, 128>}, {transform_indices = @transform_3, window_bounds = array<i64: 64, 128>}]} {
    %c0_i32 = arith.constant 0 : i32
    %0 = arith.cmpi eq, %arg1, %c0_i32 : i32
    %1 = arith.extui %0 : i1 to i32
    %c0_i32_0 = arith.constant 0 : i32
    %2 = arith.cmpi ne, %1, %c0_i32_0 : i32
    scf.if %2 {
      %cst_14 = arith.constant 0.000000e+00 : f32
      %28 = vector.broadcast %cst_14 : f32 to vector<64x128xf32>
      %c0_15 = arith.constant 0 : index
      %c0_16 = arith.constant 0 : index
      %29 = vector.load %arg5[%c0_15, %c0_16] : memref<64x128xf32, #tpu.memory_space<vmem>>, vector<64x128xf32>
      tpu.vector_store %arg5[%c0_15, %c0_16], %28 {strides = array<i32>} : memref<64x128xf32, #tpu.memory_space<vmem>>, vector<64x128xf32>,
    } else {
    }
    %c0 = arith.constant 0 : index
    %c0_1 = arith.constant 0 : index
    %3 = vector.load %arg4[%c0, %c0_1] : memref<64x128xi8, #tpu.memory_space<vmem>>, vector<64x128xi8>
    %4 = arith.sitofp %3 : vector<64x128xi8> to vector<64x128xf32>
    %c0_2 = arith.constant 0 : index
    %c0_3 = arith.constant 0 : index
    %5 = vector.load %arg2[%c0_2, %c0_3] : memref<64x128xf32, #tpu.memory_space<vmem>>, vector<64x128xf32>
    %6 = arith.mulf %5, %4 : vector<64x128xf32>
    %c0_4 = arith.constant 0 : index
    %c0_5 = arith.constant 0 : index
    %7 = vector.load %arg3[%c0_4, %c0_5] : memref<64x128xi8, #tpu.memory_space<vmem>>, vector<64x128xi8>
    %8 = arith.sitofp %7 : vector<64x128xi8> to vector<64x128xf32>
    %9 = arith.mulf %8, %4 : vector<64x128xf32>
    %10 = math.log %6 : vector<64x128xf32>
    %cst = arith.constant -1.000000e+02 : f32
    %11 = vector.broadcast %cst : f32 to vector<64x128xf32>
    %12 = arith.maximumf %10, %11 : vector<64x128xf32>
    %cst_6 = arith.constant 1.000000e+00 : f32
    %13 = vector.broadcast %cst_6 : f32 to vector<64x128xf32>
    %14 = arith.subf %13, %6 : vector<64x128xf32>
    %15 = math.log %14 : vector<64x128xf32>
    %cst_7 = arith.constant -1.000000e+02 : f32
    %16 = vector.broadcast %cst_7 : f32 to vector<64x128xf32>
    %17 = arith.maximumf %15, %16 : vector<64x128xf32>
    %18 = arith.subf %12, %17 : vector<64x128xf32>
    %19 = arith.mulf %9, %18 : vector<64x128xf32>
    %20 = arith.addf %19, %17 : vector<64x128xf32>
    %cst_8 = arith.constant 0.000000e+00 : f32
    %21 = vector.broadcast %cst_8 : f32 to vector<64x128xf32>
    %22 = arith.subf %21, %20 : vector<64x128xf32>
    %c0_9 = arith.constant 0 : index
    %c0_10 = arith.constant 0 : index
    %23 = vector.load %arg5[%c0_9, %c0_10] : memref<64x128xf32, #tpu.memory_space<vmem>>, vector<64x128xf32>
    %24 = vector.shape_cast %22 : vector<64x128xf32> to vector<1x64x128xf32>
    %cst_11 = arith.constant dense<0.000000e+00> : vector<64x128xf32>
    %25 = vector.multi_reduction <add>, %24, %cst_11 [0] : vector<1x64x128xf32> to vector<64x128xf32>
    %26 = arith.addf %23, %25 : vector<64x128xf32>
    %c0_12 = arith.constant 0 : index
    %c0_13 = arith.constant 0 : index
    %27 = vector.load %arg5[%c0_12, %c0_13] : memref<64x128xf32, #tpu.memory_space<vmem>>, vector<64x128xf32>
    tpu.vector_store %arg5[%c0_12, %c0_13], %26 {strides = array<i32>} : memref<64x128xf32, #tpu.memory_space<vmem>>, vector<64x128xf32>,
    return
  }
  func.func @transform_0(%arg0: i32, %arg1: i32) -> (i32, i32) {
    %c1_i32 = arith.constant 1 : i32
    %0 = arith.muli %arg0, %c1_i32 : i32
    %1 = arith.addi %0, %arg1 : i32
    %c0_i32 = arith.constant 0 : i32
    %c0_i32_0 = arith.constant 0 : i32
    return %1, %c0_i32 : i32, i32
  }
  func.func @transform_1(%arg0: i32, %arg1: i32) -> (i32, i32) {
    %c1_i32 = arith.constant 1 : i32
    %0 = arith.muli %arg0, %c1_i32 : i32
    %1 = arith.addi %0, %arg1 : i32
    %c0_i32 = arith.constant 0 : i32
    %c0_i32_0 = arith.constant 0 : i32
    return %1, %c0_i32 : i32, i32
  }
  func.func @transform_2(%arg0: i32, %arg1: i32) -> (i32, i32) {
    %c1_i32 = arith.constant 1 : i32
    %0 = arith.muli %arg0, %c1_i32 : i32
    %1 = arith.addi %0, %arg1 : i32
    %c0_i32 = arith.constant 0 : i32
    %c0_i32_0 = arith.constant 0 : i32
    return %1, %c0_i32 : i32, i32
  }
  func.func @transform_3(%arg0: i32, %arg1: i32) -> (i32, i32) {
    %c0_i32 = arith.constant 0 : i32
    %c0_i32_0 = arith.constant 0 : i32
    return %arg0, %c0_i32 : i32, i32
  }
}

</mosaic_0001>

<llo_original>
// kernel: _bce_loss_impl.1
$region0: #{_bce_loss_impl.1}
  #allocation0 [shape = 'u32[]', space=smem, size = 0x4, offset = 0x4, fixed_abs, tag = 'smem constant byte address 0x4 - core index']
  #allocation1 [shape = 'u32[144,128]{1,0:T(1,128)}', space=vmem, size = 0x12000, scoped, tag = 'internal scratch']
  %s0 = inlined_call_operand.vmem [shape: f32[64,128], index: 0, kind: input, shape index: {}]
  %s1 = inlined_call_operand.vmem [shape: s8[64,128], index: 1, kind: input, shape index: {}]
  %s2 = inlined_call_operand.vmem [shape: s8[64,128], index: 2, kind: input, shape index: {}]
  %s3 = inlined_call_operand.vmem [shape: f32[64,128], index: 3, kind: output, shape index: {}]
  %s4 = sld [smem:[#allocation0]]
  $region26: #{_bce_loss_impl.1} parent=0
    _
  %s6 = ssub.s32 1, %s4
  %s7 = scalar_select 0, %s6, %s4
  // Predicated region
  $region2: #{_bce_loss_impl.1} parent=0 // pred_check
    _
  $region3: #{_bce_loss_impl.1} parent=0 // pred_check_branch
    %9 = sbr.rel (0) target = $region5
  $region4: #{_bce_loss_impl.1} parent=0 // pred_region
    %s10 = sadd.s32 0, 0
    %s11 = smul.u32 8, %s10
    %p12 = scmp.lt.s32.totalorder %s11, 7
    %s13 = scalar_select %p12, %s11, 7
    %s14 = smul.addr %s13, 8
    %s15 = scalar_lea.vmem %s0, %s14
    %s16 = sadd.s32 0, 0
    %s17 = smul.u32 8, %s16
  $region5: #{_bce_loss_impl.1} parent=0 // pred_fallthru
    _
  // Predicated region
  $region6: #{_bce_loss_impl.1} parent=0 // pred_check
    _
  $region7: #{_bce_loss_impl.1} parent=0 // pred_check_branch
    %19 = sbr.rel (0) target = $region9
  $region8: #{_bce_loss_impl.1} parent=0 // pred_region
    %s20 = sadd.s32 0, 0
    %s21 = smul.u32 2, %s20
    %p22 = scmp.lt.s32.totalorder %s21, 1
    %s23 = scalar_select %p22, %s21, 1
    %s24 = smul.addr %s23, 8
    %s25 = scalar_lea.vmem %s1, %s24
    %s26 = sadd.s32 0, 0
    %s27 = smul.u32 2, %s26
  $region9: #{_bce_loss_impl.1} parent=0 // pred_fallthru
    _
  // Predicated region
  $region10: #{_bce_loss_impl.1} parent=0 // pred_check
    _
  $region11: #{_bce_loss_impl.1} parent=0 // pred_check_branch
    %29 = sbr.rel (0) target = $region13
  $region12: #{_bce_loss_impl.1} parent=0 // pred_region
    %s30 = sadd.s32 0, 0
    %s31 = smul.u32 2, %s30
    %p32 = scmp.lt.s32.totalorder %s31, 1
    %s33 = scalar_select %p32, %s31, 1
    %s34 = smul.addr %s33, 8
    %s35 = scalar_lea.vmem %s2, %s34
    %s36 = sadd.s32 0, 0
    %s37 = smul.u32 2, %s36
  $region13: #{_bce_loss_impl.1} parent=0 // pred_fallthru
    _
  %s38 = sadd.s32 0, 0
  %s39 = smul.u32 8, %s38
  %p40 = scmp.lt.s32.totalorder %s39, 7
  %s41 = scalar_select %p40, %s39, 7
  %s42 = smul.addr %s41, 8
  %s43 = scalar_lea.vmem %s0, %s42
  %s44 = sadd.s32 0, 0
  %s45 = smul.u32 2, %s44
  %p46 = scmp.lt.s32.totalorder %s45, 1
  %s47 = scalar_select %p46, %s45, 1
  %s48 = smul.addr %s47, 8
  %s49 = scalar_lea.vmem %s1, %s48
  %s50 = sadd.s32 0, 0
  %s51 = smul.u32 2, %s50
  %p52 = scmp.lt.s32.totalorder %s51, 1
  %s53 = scalar_select %p52, %s51, 1
  %s54 = smul.addr %s53, 8
  %s55 = scalar_lea.vmem %s2, %s54
  %s56 = sadd.s32 0, 0
  %s57 = smul.u32 8, %s56
  %p58 = scmp.lt.s32.totalorder %s57, 7
  %s59 = scalar_select %p58, %s57, 7
  %s60 = smul.addr %s59, 8
  %s61 = scalar_lea.vmem %s0, %s60
  %s62 = sadd.s32 0, 0
  %s63 = smul.u32 8, %s62
  %s64 = sadd.s32 0, 0
  %s65 = smul.u32 2, %s64
  %p66 = scmp.lt.s32.totalorder %s65, 1
  %s67 = scalar_select %p66, %s65, 1
  %s68 = smul.addr %s67, 8
  %s69 = scalar_lea.vmem %s1, %s68
  %s70 = sadd.s32 0, 0
  %s71 = smul.u32 2, %s70
  %s72 = sadd.s32 0, 0
  %s73 = smul.u32 2, %s72
  %p74 = scmp.lt.s32.totalorder %s73, 1
  %s75 = scalar_select %p74, %s73, 1
  %s76 = smul.addr %s75, 8
  %s77 = scalar_lea.vmem %s2, %s76
  %s78 = sadd.s32 0, 0
  %s79 = smul.u32 2, %s78
  %p80 = scmp.eq.s32.totalorder 0, 0
  // Predicated region
  $region14: #{_bce_loss_impl.1} parent=0 // pred_check
    %p81 = pneg %p80
  $region15: #{_bce_loss_impl.1} parent=0 // pred_check_branch
    %83 = sbr.rel (%p81) target = $region17
  $region16: #{_bce_loss_impl.1} parent=0 // pred_region
    %84 = vst [vmem:[%s3] sm:$0xff] 0.0
    %85 = vst [vmem:[%s3 + $0x8] sm:$0xff] 0.0
    %86 = vst [vmem:[%s3 + $0x10] sm:$0xff] 0.0
    %87 = vst [vmem:[%s3 + $0x18] sm:$0xff] 0.0
    %88 = vst [vmem:[%s3 + $0x20] sm:$0xff] 0.0
    %89 = vst [vmem:[%s3 + $0x28] sm:$0xff] 0.0
    %90 = vst [vmem:[%s3 + $0x30] sm:$0xff] 0.0
    %91 = vst [vmem:[%s3 + $0x38] sm:$0xff] 0.0
  $region17: #{_bce_loss_impl.1} parent=0 // pred_fallthru
    _
  %v92 = vld [vmem:[%s77] sm:$0xff]
  %v93 = vld [vmem:[%s77 + $0x8] sm:$0xff]
  %v94 = vunpack.c.0.s8 %v92
  %v95 = vunpack.c.1.s8 %v92
  %v96 = vunpack.c.2.s8 %v92
  %v97 = vunpack.c.3.s8 %v92
  %v98 = vunpack.c.0.s8 %v93
  %v99 = vunpack.c.1.s8 %v93
  %v100 = vunpack.c.2.s8 %v93
  %v101 = vunpack.c.3.s8 %v93
  %v102 = vcvt.s32.f32 %v94
  %v103 = vcvt.s32.f32 %v95
  %v104 = vcvt.s32.f32 %v96
  %v105 = vcvt.s32.f32 %v97
  %v106 = vcvt.s32.f32 %v98
  %v107 = vcvt.s32.f32 %v99
  %v108 = vcvt.s32.f32 %v100
  %v109 = vcvt.s32.f32 %v101
  %v110 = vld [vmem:[%s61] sm:$0xff]
  %v111 = vld [vmem:[%s61 + $0x8] sm:$0xff]
  %v112 = vld [vmem:[%s61 + $0x10] sm:$0xff]
  %v113 = vld [vmem:[%s61 + $0x18] sm:$0xff]
  %v114 = vld [vmem:[%s61 + $0x20] sm:$0xff]
  %v115 = vld [vmem:[%s61 + $0x28] sm:$0xff]
  %v116 = vld [vmem:[%s61 + $0x30] sm:$0xff]
  %v117 = vld [vmem:[%s61 + $0x38] sm:$0xff]
  %v118 = vmul.f32 %v110, %v102
  %v119 = vmul.f32 %v111, %v103
  %v120 = vmul.f32 %v112, %v104
  %v121 = vmul.f32 %v113, %v105
  %v122 = vmul.f32 %v114, %v106
  %v123 = vmul.f32 %v115, %v107
  %v124 = vmul.f32 %v116, %v108
  %v125 = vmul.f32 %v117, %v109
  %v126 = vld [vmem:[%s69] sm:$0xff]
  %v127 = vld [vmem:[%s69 + $0x8] sm:$0xff]
  %v128 = vunpack.c.0.s8 %v126
  %v129 = vunpack.c.1.s8 %v126
  %v130 = vunpack.c.2.s8 %v126
  %v131 = vunpack.c.3.s8 %v126
  %v132 = vunpack.c.0.s8 %v127
  %v133 = vunpack.c.1.s8 %v127
  %v134 = vunpack.c.2.s8 %v127
  %v135 = vunpack.c.3.s8 %v127
  %v136 = vcvt.s32.f32 %v128
  %v137 = vcvt.s32.f32 %v129
  %v138 = vcvt.s32.f32 %v130
  %v139 = vcvt.s32.f32 %v131
  %v140 = vcvt.s32.f32 %v132
  %v141 = vcvt.s32.f32 %v133
  %v142 = vcvt.s32.f32 %v134
  %v143 = vcvt.s32.f32 %v135
  %v144 = vmul.f32 %v136, %v102
  %v145 = vmul.f32 %v137, %v103
  %v146 = vmul.f32 %v138, %v104
  %v147 = vmul.f32 %v139, %v105
  %v148 = vmul.f32 %v140, %v106
  %v149 = vmul.f32 %v141, %v107
  %v150 = vmul.f32 %v142, %v108
  %v151 = vmul.f32 %v143, %v109
  %v152 = vlog2.pop %v118
  %v153 = vmul.f32 %v152, 0.6931472
  %v154 = vlog2.pop %v119
  %v155 = vmul.f32 %v154, 0.6931472
  %v156 = vlog2.pop %v120
  %v157 = vmul.f32 %v156, 0.6931472
  %v158 = vlog2.pop %v121
  %v159 = vmul.f32 %v158, 0.6931472
  %v160 = vlog2.pop %v122
  %v161 = vmul.f32 %v160, 0.6931472
  %v162 = vlog2.pop %v123
  %v163 = vmul.f32 %v162, 0.6931472
  %v164 = vlog2.pop %v124
  %v165 = vmul.f32 %v164, 0.6931472
  %v166 = vlog2.pop %v125
  %v167 = vmul.f32 %v166, 0.6931472
  %v168 = vmax.f32 %v153, -100.0
  %v169 = vmax.f32 %v155, -100.0
  %v170 = vmax.f32 %v157, -100.0
  %v171 = vmax.f32 %v159, -100.0
  %v172 = vmax.f32 %v161, -100.0
  %v173 = vmax.f32 %v163, -100.0
  %v174 = vmax.f32 %v165, -100.0
  %v175 = vmax.f32 %v167, -100.0
  %v176 = vsub.f32 1.0, %v118
  %v177 = vsub.f32 1.0, %v119
  %v178 = vsub.f32 1.0, %v120
  %v179 = vsub.f32 1.0, %v121
  %v180 = vsub.f32 1.0, %v122
  %v181 = vsub.f32 1.0, %v123
  %v182 = vsub.f32 1.0, %v124
  %v183 = vsub.f32 1.0, %v125
  %v184 = vlog2.pop %v176
  %v185 = vmul.f32 %v184, 0.6931472
  %v186 = vlog2.pop %v177
  %v187 = vmul.f32 %v186, 0.6931472
  %v188 = vlog2.pop %v178
  %v189 = vmul.f32 %v188, 0.6931472
  %v190 = vlog2.pop %v179
  %v191 = vmul.f32 %v190, 0.6931472
  %v192 = vlog2.pop %v180
  %v193 = vmul.f32 %v192, 0.6931472
  %v194 = vlog2.pop %v181
  %v195 = vmul.f32 %v194, 0.6931472
  %v196 = vlog2.pop %v182
  %v197 = vmul.f32 %v196, 0.6931472
  %v198 = vlog2.pop %v183
  %v199 = vmul.f32 %v198, 0.6931472
  %v200 = vmax.f32 %v185, -100.0
  %v201 = vmax.f32 %v187, -100.0
  %v202 = vmax.f32 %v189, -100.0
  %v203 = vmax.f32 %v191, -100.0
  %v204 = vmax.f32 %v193, -100.0
  %v205 = vmax.f32 %v195, -100.0
  %v206 = vmax.f32 %v197, -100.0
  %v207 = vmax.f32 %v199, -100.0
  %v208 = vsub.f32 %v168, %v200
  %v209 = vsub.f32 %v169, %v201
  %v210 = vsub.f32 %v170, %v202
  %v211 = vsub.f32 %v171, %v203
  %v212 = vsub.f32 %v172, %v204
  %v213 = vsub.f32 %v173, %v205
  %v214 = vsub.f32 %v174, %v206
  %v215 = vsub.f32 %v175, %v207
  %v216 = vmul.f32 %v144, %v208
  %v217 = vmul.f32 %v145, %v209
  %v218 = vmul.f32 %v146, %v210
  %v219 = vmul.f32 %v147, %v211
  %v220 = vmul.f32 %v148, %v212
  %v221 = vmul.f32 %v149, %v213
  %v222 = vmul.f32 %v150, %v214
  %v223 = vmul.f32 %v151, %v215
  %v224 = vadd.f32 %v216, %v200
  %v225 = vadd.f32 %v217, %v201
  %v226 = vadd.f32 %v218, %v202
  %v227 = vadd.f32 %v219, %v203
  %v228 = vadd.f32 %v220, %v204
  %v229 = vadd.f32 %v221, %v205
  %v230 = vadd.f32 %v222, %v206
  %v231 = vadd.f32 %v223, %v207
  %v232 = vsub.f32 0.0, %v224
  %v233 = vsub.f32 0.0, %v225
  %v234 = vsub.f32 0.0, %v226
  %v235 = vsub.f32 0.0, %v227
  %v236 = vsub.f32 0.0, %v228
  %v237 = vsub.f32 0.0, %v229
  %v238 = vsub.f32 0.0, %v230
  %v239 = vsub.f32 0.0, %v231
  %v240 = vld [vmem:[%s3] sm:$0xff]
  %v241 = vld [vmem:[%s3 + $0x8] sm:$0xff]
  %v242 = vld [vmem:[%s3 + $0x10] sm:$0xff]
  %v243 = vld [vmem:[%s3 + $0x18] sm:$0xff]
  %v244 = vld [vmem:[%s3 + $0x20] sm:$0xff]
  %v245 = vld [vmem:[%s3 + $0x28] sm:$0xff]
  %v246 = vld [vmem:[%s3 + $0x30] sm:$0xff]
  %v247 = vld [vmem:[%s3 + $0x38] sm:$0xff]
  %v248 = vadd.f32 %v232, 0.0
  %v249 = vadd.f32 %v233, 0.0
  %v250 = vadd.f32 %v234, 0.0
  %v251 = vadd.f32 %v235, 0.0
  %v252 = vadd.f32 %v236, 0.0
  %v253 = vadd.f32 %v237, 0.0
  %v254 = vadd.f32 %v238, 0.0
  %v255 = vadd.f32 %v239, 0.0
  %v256 = vadd.f32 %v240, %v248
  %v257 = vadd.f32 %v241, %v249
  %v258 = vadd.f32 %v242, %v250
  %v259 = vadd.f32 %v243, %v251
  %v260 = vadd.f32 %v244, %v252
  %v261 = vadd.f32 %v245, %v253
  %v262 = vadd.f32 %v246, %v254
  %v263 = vadd.f32 %v247, %v255
  %264 = vst [vmem:[%s3] sm:$0xff] %v256
  %265 = vst [vmem:[%s3 + $0x8] sm:$0xff] %v257
  %266 = vst [vmem:[%s3 + $0x10] sm:$0xff] %v258
  %267 = vst [vmem:[%s3 + $0x18] sm:$0xff] %v259
  %268 = vst [vmem:[%s3 + $0x20] sm:$0xff] %v260
  %269 = vst [vmem:[%s3 + $0x28] sm:$0xff] %v261
  %270 = vst [vmem:[%s3 + $0x30] sm:$0xff] %v262
  %271 = vst [vmem:[%s3 + $0x38] sm:$0xff] %v263
  // Predicated region
  $region18: #{_bce_loss_impl.1} parent=0 // pred_check
    _
  $region19: #{_bce_loss_impl.1} parent=0 // pred_check_branch
    %273 = sbr.rel (0) target = $region21
  $region20: #{_bce_loss_impl.1} parent=0 // pred_region
    _
  $region21: #{_bce_loss_impl.1} parent=0 // pred_fallthru
    _
  // Predicated region
  $region22: #{_bce_loss_impl.1} parent=0 // pred_check
    _
  $region23: #{_bce_loss_impl.1} parent=0 // pred_check_branch
    %275 = sbr.rel (0) target = $region25
  $region24: #{_bce_loss_impl.1} parent=0 // pred_region
    _
  $region25: #{_bce_loss_impl.1} parent=0 // pred_fallthru
    _

</llo_original>
